<compile_context>
chip_gen: v7x
topology: tpu7x:2x2x1
jax: 0.10.0
libtpu: 0.0.40
codegen_flags: <defaults>
</compile_context>

<pallas_src>
import functools

import jax
import jax.numpy as jnp
from jax.experimental import pallas as pl
from jax.experimental.pallas import tpu as pltpu


def _round_up(x, m):
    return (x + m - 1) // m * m


def _fused_mlp_kernel(x_ref, w0_ref, b0_ref, wr_ref, br_ref, o_ref,
                      *, depth, insize):
    """Fused MLP forward for one batch tile.

    x_ref : [TB, insize]          (unpadded feature dim)
    w0_ref: [insize, NP]          (first layer, lane-padded out dim)
    b0_ref: [1, NP]
    wr_ref: [depth-1, NP, NP]     (hidden + last layers, zero-padded)
    br_ref: [depth-1, 1, NP]
    o_ref : [TB, NP]              (lane-padded output slab)
    """
    x = x_ref[...].astype(jnp.float32)

    # ---- Layer 0: tiny K -> VPU broadcast-multiply-add (skip the MXU). ----
    if insize <= 8:
        w0 = w0_ref[...].astype(jnp.float32)
        h = x[:, 0:1] * w0[0:1, :]
        for j in range(1, insize):
            h = h + x[:, j:j + 1] * w0[j:j + 1, :]
    else:
        h = jnp.dot(x.astype(w0_ref.dtype), w0_ref[...],
                    preferred_element_type=jnp.float32)
    h = h + b0_ref[...].astype(jnp.float32)
    h = jnp.maximum(h, 0.0)            # ReLU (depth >= 2, so layer 0 has act)

    # ---- Layers 1..depth-1: lane-dense 128-wide matmuls on the MXU. ----
    for i in range(depth - 1):
        y = jnp.dot(h.astype(wr_ref.dtype), wr_ref[i],
                    preferred_element_type=jnp.float32)
        y = y + br_ref[i].astype(jnp.float32)
        if i != depth - 2:             # no activation after the final layer
            y = jnp.maximum(y, 0.0)
        h = y

    o_ref[...] = h.astype(o_ref.dtype)


def mlp_discriminator_forward(x, params, compute_dtype=jnp.float32):
    """x: [B, insize]; params: list of (w [in,out], b [out]) per layer."""
    depth = len(params)
    # TODO(synk): depth == 1 (PyTorch builds Linear(insize, width), no act) is
    # not handled by the fused kernel; only depth >= 2 is supported here.
    assert depth >= 2, "fused kernel supports depth >= 2"

    insize = params[0][0].shape[0]
    width = params[0][0].shape[1]
    outsize = params[-1][0].shape[1]
    NP = _round_up(max(width, outsize, 1), 128)   # lane-padded hidden/out width

    B = x.shape[0]
    TB = 256 if B >= 256 else _round_up(B, 8)      # batch tile (sublane-aligned)
    B_pad = _round_up(B, TB)

    f32 = jnp.float32
    x_pad = jnp.pad(x.astype(f32), ((0, B_pad - B), (0, 0)))

    # First layer, lane-padded output dim (padded cols/lanes are zero).
    w0, b0 = params[0]
    w0_pad = jnp.pad(w0.astype(f32), ((0, 0), (0, NP - width)))
    b0_pad = jnp.pad(b0.astype(f32).reshape(1, -1), ((0, 0), (0, NP - width)))

    # Remaining layers stacked into [depth-1, NP, NP] / [depth-1, 1, NP].
    wr_list, br_list = [], []
    for (w, b) in params[1:]:
        kin, kout = w.shape
        wr_list.append(jnp.pad(w.astype(f32), ((0, NP - kin), (0, NP - kout))))
        br_list.append(jnp.pad(b.astype(f32).reshape(1, -1),
                               ((0, 0), (0, NP - kout))))
    wr = jnp.stack(wr_list, axis=0).astype(compute_dtype)
    br = jnp.stack(br_list, axis=0)
    w0_pad = w0_pad.astype(compute_dtype)

    # VMEM budget: double-buffered x/out tiles + resident (padded) weights.
    wbytes = jnp.dtype(compute_dtype).itemsize
    est = (2 * TB * insize * 4 + 2 * TB * NP * 4
           + 2 * (insize * NP * wbytes + NP * 4)
           + 2 * (depth - 1) * (NP * NP * wbytes + NP * 4)
           + (1 << 20))
    vmem_bytes = max(32 * 1024 * 1024, min(64 * 1024 * 1024, est))

    kernel = functools.partial(_fused_mlp_kernel, depth=depth, insize=insize)

    out = pl.pallas_call(
        kernel,
        out_shape=jax.ShapeDtypeStruct((B_pad, NP), f32),
        grid=(B_pad // TB,),
        in_specs=[
            pl.BlockSpec((TB, insize), lambda i: (i, 0)),            # x tile
            pl.BlockSpec((insize, NP), lambda i: (0, 0)),            # w0
            pl.BlockSpec((1, NP), lambda i: (0, 0)),                 # b0
            pl.BlockSpec((depth - 1, NP, NP), lambda i: (0, 0, 0)),  # w[1:]
            pl.BlockSpec((depth - 1, 1, NP), lambda i: (0, 0, 0)),   # b[1:]
        ],
        out_specs=pl.BlockSpec((TB, NP), lambda i: (i, 0)),          # lane-dense
        compiler_params=pltpu.CompilerParams(
            dimension_semantics=("parallel",),   # batch tiles -> v7x 2 TCs
            vmem_limit_bytes=vmem_bytes,
        ),
    )(x_pad, w0_pad, b0_pad, wr, br)

    return out[:B, :outsize]


def init_mlp_discriminator_params(key, depth, width, insize=2, outsize=1,
                                  dtype=jnp.float32):
    """Deterministic init matching torch.nn.Linear default U(-1/sqrt(fan_in), +)."""
    params = []
    for i in range(depth):
        fan_in = insize if i == 0 else width
        fan_out = width if i == 0 else (outsize if i == depth - 1 else width)
        key, kw, kb = jax.random.split(key, 3)
        bound = 1.0 / float(fan_in) ** 0.5
        w = jax.random.uniform(kw, (fan_in, fan_out), dtype, -bound, bound)
        b = jax.random.uniform(kb, (fan_out,), dtype, -bound, bound)
        params.append((w, b))
    return params


def _reference_forward(x, params):
    h = x
    for i, (w, b) in enumerate(params):
        h = h @ w + b
        if i != len(params) - 1:
            h = jnp.maximum(h, 0.0)
    return h


if __name__ == "__main__":
    depth, width, insize, outsize = 3, 32, 2, 1
    batch = 8

    key = jax.random.PRNGKey(0)
    key, kx = jax.random.split(key)
    x = jax.random.normal(kx, (batch, insize), jnp.float32)

    params = init_mlp_discriminator_params(key, depth, width, insize, outsize)

    fwd = jax.jit(mlp_discriminator_forward)
    out = jax.block_until_ready(fwd(x, params))

    ref = _reference_forward(x, params)
    assert out.shape == (batch, outsize)
    assert jnp.allclose(out, ref, atol=1e-4, rtol=1e-4), (out, ref)

    print("KERNEL_OK")
</pallas_src>

<mosaic_0001>
module attributes {stable_mosaic.version = 11 : i64} {
  func.func @_fused_mlp_kernel(%arg0: i32, %arg1: memref<8x2xf32, #tpu.memory_space<vmem>>, %arg2: memref<2x128xf32, #tpu.memory_space<vmem>>, %arg3: memref<1x128xf32, #tpu.memory_space<vmem>>, %arg4: memref<2x128x128xf32, #tpu.memory_space<vmem>>, %arg5: memref<2x1x128xf32, #tpu.memory_space<vmem>>, %arg6: memref<8x128xf32, #tpu.memory_space<vmem>>) attributes {dimension_semantics = [#tpu.dimension_semantics<parallel>], iteration_bounds = array<i64: 1>, scalar_prefetch = 0 : i64, scratch_operands = 0 : i64, tpu.core_type = #tpu.core_type<tc>, window_params = [{transform_indices = @transform_0, window_bounds = array<i64: 8, 2>}, {pipeline_mode = #tpu.pipeline_mode<synchronous>, transform_indices = @transform_1, window_bounds = array<i64: 2, 128>}, {pipeline_mode = #tpu.pipeline_mode<synchronous>, transform_indices = @transform_2, window_bounds = array<i64: 1, 128>}, {pipeline_mode = #tpu.pipeline_mode<synchronous>, transform_indices = @transform_3, window_bounds = array<i64: 2, 128, 128>}, {pipeline_mode = #tpu.pipeline_mode<synchronous>, transform_indices = @transform_4, window_bounds = array<i64: 2, 1, 128>}, {transform_indices = @transform_5, window_bounds = array<i64: 8, 128>}]} {
    %c0 = arith.constant 0 : index
    %c0_0 = arith.constant 0 : index
    %0 = vector.load %arg1[%c0, %c0_0] : memref<8x2xf32, #tpu.memory_space<vmem>>, vector<8x2xf32>
    %c0_1 = arith.constant 0 : index
    %c0_2 = arith.constant 0 : index
    %1 = vector.load %arg2[%c0_1, %c0_2] : memref<2x128xf32, #tpu.memory_space<vmem>>, vector<2x128xf32>
    %2 = vector.extract_strided_slice %0 {offsets = [0, 0], sizes = [8, 1], strides = [1, 1]} : vector<8x2xf32> to vector<8x1xf32>
    %3 = vector.extract_strided_slice %1 {offsets = [0, 0], sizes = [1, 128], strides = [1, 1]} : vector<2x128xf32> to vector<1x128xf32>
    %4 = vector.broadcast %2 : vector<8x1xf32> to vector<8x128xf32>
    %5 = vector.broadcast %3 : vector<1x128xf32> to vector<8x128xf32>
    %6 = arith.mulf %4, %5 : vector<8x128xf32>
    %7 = vector.extract_strided_slice %0 {offsets = [0, 1], sizes = [8, 1], strides = [1, 1]} : vector<8x2xf32> to vector<8x1xf32>
    %8 = vector.extract_strided_slice %1 {offsets = [1, 0], sizes = [1, 128], strides = [1, 1]} : vector<2x128xf32> to vector<1x128xf32>
    %9 = vector.broadcast %7 : vector<8x1xf32> to vector<8x128xf32>
    %10 = vector.broadcast %8 : vector<1x128xf32> to vector<8x128xf32>
    %11 = arith.mulf %9, %10 : vector<8x128xf32>
    %12 = arith.addf %6, %11 : vector<8x128xf32>
    %c0_3 = arith.constant 0 : index
    %c0_4 = arith.constant 0 : index
    %13 = vector.load %arg3[%c0_3, %c0_4] : memref<1x128xf32, #tpu.memory_space<vmem>>, vector<1x128xf32>
    %14 = vector.broadcast %13 : vector<1x128xf32> to vector<8x128xf32>
    %15 = arith.addf %12, %14 : vector<8x128xf32>
    %cst = arith.constant 0.000000e+00 : f32
    %16 = vector.broadcast %cst : f32 to vector<8x128xf32>
    %17 = arith.maximumf %15, %16 : vector<8x128xf32>
    %c0_5 = arith.constant 0 : index
    %c0_6 = arith.constant 0 : index
    %c0_7 = arith.constant 0 : index
    %18 = vector.load %arg4[%c0_5, %c0_6, %c0_7] : memref<2x128x128xf32, #tpu.memory_space<vmem>>, vector<1x128x128xf32>
    %19 = vector.shape_cast %18 : vector<1x128x128xf32> to vector<128x128xf32>
    %cst_8 = arith.constant dense<0.000000e+00> : vector<8x128xf32>
    %20 = tpu.matmul %17, %19, %cst_8 {dimension_numbers = #tpu.dot_dimension_numbers<[1], [0], [0], [1], [0, 0, 1, 1], [], []>} : vector<8x128xf32>, vector<128x128xf32>, vector<8x128xf32> -> vector<8x128xf32>
    %c0_9 = arith.constant 0 : index
    %c0_10 = arith.constant 0 : index
    %c0_11 = arith.constant 0 : index
    %21 = vector.load %arg5[%c0_9, %c0_10, %c0_11] : memref<2x1x128xf32, #tpu.memory_space<vmem>>, vector<1x1x128xf32>
    %22 = vector.shape_cast %21 : vector<1x1x128xf32> to vector<1x128xf32>
    %23 = vector.broadcast %22 : vector<1x128xf32> to vector<8x128xf32>
    %24 = arith.addf %20, %23 : vector<8x128xf32>
    %cst_12 = arith.constant 0.000000e+00 : f32
    %25 = vector.broadcast %cst_12 : f32 to vector<8x128xf32>
    %26 = arith.maximumf %24, %25 : vector<8x128xf32>
    %c1 = arith.constant 1 : index
    %c0_13 = arith.constant 0 : index
    %c0_14 = arith.constant 0 : index
    %27 = vector.load %arg4[%c1, %c0_13, %c0_14] : memref<2x128x128xf32, #tpu.memory_space<vmem>>, vector<1x128x128xf32>
    %28 = vector.shape_cast %27 : vector<1x128x128xf32> to vector<128x128xf32>
    %cst_15 = arith.constant dense<0.000000e+00> : vector<8x128xf32>
    %29 = tpu.matmul %26, %28, %cst_15 {dimension_numbers = #tpu.dot_dimension_numbers<[1], [0], [0], [1], [0, 0, 1, 1], [], []>} : vector<8x128xf32>, vector<128x128xf32>, vector<8x128xf32> -> vector<8x128xf32>
    %c1_16 = arith.constant 1 : index
    %c0_17 = arith.constant 0 : index
    %c0_18 = arith.constant 0 : index
    %30 = vector.load %arg5[%c1_16, %c0_17, %c0_18] : memref<2x1x128xf32, #tpu.memory_space<vmem>>, vector<1x1x128xf32>
    %31 = vector.shape_cast %30 : vector<1x1x128xf32> to vector<1x128xf32>
    %32 = vector.broadcast %31 : vector<1x128xf32> to vector<8x128xf32>
    %33 = arith.addf %29, %32 : vector<8x128xf32>
    %c0_19 = arith.constant 0 : index
    %c0_20 = arith.constant 0 : index
    %34 = vector.load %arg6[%c0_19, %c0_20] : memref<8x128xf32, #tpu.memory_space<vmem>>, vector<8x128xf32>
    tpu.vector_store %arg6[%c0_19, %c0_20], %33 {strides = array<i32>} : memref<8x128xf32, #tpu.memory_space<vmem>>, vector<8x128xf32>,
    return
  }
  func.func @transform_0(%arg0: i32) -> (i32, i32) {
    %c0_i32 = arith.constant 0 : i32
    %c0_i32_0 = arith.constant 0 : i32
    return %arg0, %c0_i32 : i32, i32
  }
  func.func @transform_1(%arg0: i32) -> (i32, i32) {
    %c0_i32 = arith.constant 0 : i32
    %c0_i32_0 = arith.constant 0 : i32
    %c0_i32_1 = arith.constant 0 : i32
    return %c0_i32, %c0_i32_0 : i32, i32
  }
  func.func @transform_2(%arg0: i32) -> (i32, i32) {
    %c0_i32 = arith.constant 0 : i32
    %c0_i32_0 = arith.constant 0 : i32
    %c0_i32_1 = arith.constant 0 : i32
    return %c0_i32, %c0_i32_0 : i32, i32
  }
  func.func @transform_3(%arg0: i32) -> (i32, i32, i32) {
    %c0_i32 = arith.constant 0 : i32
    %c0_i32_0 = arith.constant 0 : i32
    %c0_i32_1 = arith.constant 0 : i32
    %c0_i32_2 = arith.constant 0 : i32
    return %c0_i32, %c0_i32_0, %c0_i32_1 : i32, i32, i32
  }
  func.func @transform_4(%arg0: i32) -> (i32, i32, i32) {
    %c0_i32 = arith.constant 0 : i32
    %c0_i32_0 = arith.constant 0 : i32
    %c0_i32_1 = arith.constant 0 : i32
    %c0_i32_2 = arith.constant 0 : i32
    return %c0_i32, %c0_i32_0, %c0_i32_1 : i32, i32, i32
  }
  func.func @transform_5(%arg0: i32) -> (i32, i32) {
    %c0_i32 = arith.constant 0 : i32
    %c0_i32_0 = arith.constant 0 : i32
    return %arg0, %c0_i32 : i32, i32
  }
}

</mosaic_0001>

<llo_original>
// kernel: mlp_discriminator_forward.1
$region0: #{mlp_discriminator_forward.1}
  #allocation0 [shape = 'u32[]', space=smem, size = 0x4, offset = 0x4, fixed_abs, tag = 'smem constant byte address 0x4 - core index']
  #allocation1 [shape = 'u32[144,128]{1,0:T(1,128)}', space=vmem, size = 0x12000, scoped, tag = 'internal scratch']
  %s0 = inlined_call_operand.vmem [shape: f32[8,2], index: 0, kind: input, shape index: {}]
  %s1 = inlined_call_operand.vmem [shape: f32[2,128], index: 1, kind: input, shape index: {}]
  %s2 = inlined_call_operand.vmem [shape: f32[1,128], index: 2, kind: input, shape index: {}]
  %s3 = inlined_call_operand.vmem [shape: f32[2,128,128], index: 3, kind: input, shape index: {}]
  %s4 = inlined_call_operand.vmem [shape: f32[2,1,128], index: 4, kind: input, shape index: {}]
  %s5 = inlined_call_operand.vmem [shape: f32[8,128], index: 5, kind: output, shape index: {}]
  %s6 = sld [smem:[#allocation0]]
  $region30: #{mlp_discriminator_forward.1} parent=0
    _
  %s8 = ssub.s32 1, %s6
  %s9 = scalar_select 0, %s8, %s6
  // Predicated region
  $region2: #{mlp_discriminator_forward.1} parent=0 // pred_check
    _
  $region3: #{mlp_discriminator_forward.1} parent=0 // pred_check_branch
    %11 = sbr.rel (0) target = $region5
  $region4: #{mlp_discriminator_forward.1} parent=0 // pred_region
    _
  $region5: #{mlp_discriminator_forward.1} parent=0 // pred_fallthru
    _
  // Predicated region
  $region6: #{mlp_discriminator_forward.1} parent=0 // pred_check
    _
  $region7: #{mlp_discriminator_forward.1} parent=0 // pred_check_branch
    %13 = sbr.rel (0) target = $region9
  $region8: #{mlp_discriminator_forward.1} parent=0 // pred_region
    _
  $region9: #{mlp_discriminator_forward.1} parent=0 // pred_fallthru
    _
  // Predicated region
  $region10: #{mlp_discriminator_forward.1} parent=0 // pred_check
    _
  $region11: #{mlp_discriminator_forward.1} parent=0 // pred_check_branch
    %15 = sbr.rel (0) target = $region13
  $region12: #{mlp_discriminator_forward.1} parent=0 // pred_region
    _
  $region13: #{mlp_discriminator_forward.1} parent=0 // pred_fallthru
    _
  // Predicated region
  $region14: #{mlp_discriminator_forward.1} parent=0 // pred_check
    _
  $region15: #{mlp_discriminator_forward.1} parent=0 // pred_check_branch
    %17 = sbr.rel (0) target = $region17
  $region16: #{mlp_discriminator_forward.1} parent=0 // pred_region
    _
  $region17: #{mlp_discriminator_forward.1} parent=0 // pred_fallthru
    _
  // Predicated region
  $region18: #{mlp_discriminator_forward.1} parent=0 // pred_check
    _
  $region19: #{mlp_discriminator_forward.1} parent=0 // pred_check_branch
    %19 = sbr.rel (0) target = $region21
  $region20: #{mlp_discriminator_forward.1} parent=0 // pred_region
    _
  $region21: #{mlp_discriminator_forward.1} parent=0 // pred_fallthru
    _
  %v20 = vld [vmem:[%s0] sm:$0xff]
  %v21 = vld [vmem:[%s1] sm:$0x3]
  %23 = vset.pattern.permute.xlu0 0
  %24 = vperm.xlu0 %23, %v20
  %v25 = vpop.permute.xlu0 %24
  %v27 = vlaneseq
  %v28 = vshrl.u32 %v27, 7
  %v29 = vsub.s32 0, %v28
  %v30 = vrot.slane %v21, %v29
  %v31 = vmul.f32 %v25, %v30
  %32 = vset.pattern.permute.xlu0 1
  %33 = vperm.xlu0 %32, %v20
  %v34 = vpop.permute.xlu0 %33
  %v36 = vlaneseq
  %v37 = vshrl.u32 %v36, 7
  %v38 = vsub.s32 1, %v37
  %v39 = vrot.slane %v21, %v38
  %v40 = vmul.f32 %v34, %v39
  %v41 = vadd.f32 %v31, %v40
  %v42 = vld [vmem:[%s2] sm:$0x1]
  %v44 = vlaneseq
  %v45 = vshrl.u32 %v44, 7
  %v46 = vsub.s32 0, %v45
  %v47 = vrot.slane %v42, %v46
  %v49 = vadd.f32 %v41, %v47
  %v50 = vmax.f32 %v49, 0.0
  %v51 = vld [vmem:[%s3] sm:$0xff]
  %v52 = vld [vmem:[%s3 + $0x8] sm:$0xff]
  %v53 = vld [vmem:[%s3 + $0x10] sm:$0xff]
  %v54 = vld [vmem:[%s3 + $0x18] sm:$0xff]
  %v55 = vld [vmem:[%s3 + $0x20] sm:$0xff]
  %v56 = vld [vmem:[%s3 + $0x28] sm:$0xff]
  %v57 = vld [vmem:[%s3 + $0x30] sm:$0xff]
  %v58 = vld [vmem:[%s3 + $0x38] sm:$0xff]
  %v59 = vld [vmem:[%s3 + $0x40] sm:$0xff]
  %v60 = vld [vmem:[%s3 + $0x48] sm:$0xff]
  %v61 = vld [vmem:[%s3 + $0x50] sm:$0xff]
  %v62 = vld [vmem:[%s3 + $0x58] sm:$0xff]
  %v63 = vld [vmem:[%s3 + $0x60] sm:$0xff]
  %v64 = vld [vmem:[%s3 + $0x68] sm:$0xff]
  %v65 = vld [vmem:[%s3 + $0x70] sm:$0xff]
  %v66 = vld [vmem:[%s3 + $0x78] sm:$0xff]
  %v67 = vld [vmem:[%s4] sm:$0x1]
  %v69 = vlaneseq
  %v70 = vshrl.u32 %v69, 7
  %v71 = vsub.s32 0, %v70
  %v72 = vrot.slane %v67, %v71
  %74 = vmatprep.subr.mxu0 0.0
  %75 = vmatpush1.msra.mxu0 %v51
  %76 = vmatprep.subr.mxu0 0.0
  %77 = vmatpush1.msra.mxu0 %v52
  %78 = vmatprep.subr.mxu0 0.0
  %79 = vmatpush1.msra.mxu0 %v53
  %80 = vmatprep.subr.mxu0 0.0
  %81 = vmatpush1.msra.mxu0 %v54
  %82 = vmatprep.subr.mxu0 0.0
  %83 = vmatpush1.msra.mxu0 %v55
  %84 = vmatprep.subr.mxu0 0.0
  %85 = vmatpush1.msra.mxu0 %v56
  %86 = vmatprep.subr.mxu0 0.0
  %87 = vmatpush1.msra.mxu0 %v57
  %88 = vmatprep.subr.mxu0 0.0
  %89 = vmatpush1.msra.mxu0 %v58
  %90 = vmatprep.subr.mxu0 0.0
  %91 = vmatpush1.msra.mxu0 %v59
  %92 = vmatprep.subr.mxu0 0.0
  %93 = vmatpush1.msra.mxu0 %v60
  %94 = vmatprep.subr.mxu0 0.0
  %95 = vmatpush1.msra.mxu0 %v61
  %96 = vmatprep.subr.mxu0 0.0
  %97 = vmatpush1.msra.mxu0 %v62
  %98 = vmatprep.subr.mxu0 0.0
  %99 = vmatpush1.msra.mxu0 %v63
  %100 = vmatprep.subr.mxu0 0.0
  %101 = vmatpush1.msra.mxu0 %v64
  %102 = vmatprep.subr.mxu0 0.0
  %103 = vmatpush1.msra.mxu0 %v65
  %104 = vmatprep.subr.mxu0 0.0
  %105 = vmatpush1.msra.mxu0 %v66
  %106 = vmatprep.subr.mxu0 0.0
  %107 = vmatpush1.msra.mxu0 0.0
  %108 = vmatprep.subr.mxu0 0.0
  %109 = vmatpush1.msra.mxu0 0.0
  %110 = vmatprep.subr.mxu0 0.0
  %111 = vmatpush1.msra.mxu0 0.0
  %112 = vmatprep.subr.mxu0 0.0
  %113 = vmatpush1.msra.mxu0 0.0
  %114 = vmatprep.subr.mxu0 0.0
  %115 = vmatpush1.msra.mxu0 0.0
  %116 = vmatprep.subr.mxu0 0.0
  %117 = vmatpush1.msra.mxu0 0.0
  %118 = vmatprep.subr.mxu0 0.0
  %119 = vmatpush1.msra.mxu0 0.0
  %120 = vmatprep.subr.mxu0 0.0
  %121 = vmatpush1.msra.mxu0 0.0
  %122 = vmatprep.subr.mxu0 0.0
  %123 = vmatpush1.msra.mxu0 0.0
  %124 = vmatprep.subr.mxu0 0.0
  %125 = vmatpush1.msra.mxu0 0.0
  %126 = vmatprep.subr.mxu0 0.0
  %127 = vmatpush1.msra.mxu0 0.0
  %128 = vmatprep.subr.mxu0 0.0
  %129 = vmatpush1.msra.mxu0 0.0
  %130 = vmatprep.subr.mxu0 0.0
  %131 = vmatpush1.msra.mxu0 0.0
  %132 = vmatprep.subr.mxu0 0.0
  %133 = vmatpush1.msra.mxu0 0.0
  %134 = vmatprep.subr.mxu0 0.0
  %135 = vmatpush1.msra.mxu0 0.0
  %136 = vmatprep.subr.mxu0 0.0
  %137 = vmatpush1.msra.mxu0 0.0
  %138 = vmatprep.mubr.f32.mxu0 0.0
  %139 = vmatmul.mubr.f32.gmra.mrb[0].mxu0 %v50
  %v140 = vpop.f32.mrb[0].mxu0
  %v141 = vadd.f32 %v72, %v140
  %v142 = vpop.f32.mrb[0].mxu0
  %143 = vdwg.mxu0
  %v144 = vmax.f32 %v141, 0.0
  %s145 = scalar_lea.vmem %s3, 128
  %v146 = vld [vmem:[%s145] sm:$0xff]
  %v147 = vld [vmem:[%s145 + $0x8] sm:$0xff]
  %v148 = vld [vmem:[%s145 + $0x10] sm:$0xff]
  %v149 = vld [vmem:[%s145 + $0x18] sm:$0xff]
  %v150 = vld [vmem:[%s145 + $0x20] sm:$0xff]
  %v151 = vld [vmem:[%s145 + $0x28] sm:$0xff]
  %v152 = vld [vmem:[%s145 + $0x30] sm:$0xff]
  %v153 = vld [vmem:[%s145 + $0x38] sm:$0xff]
  %v154 = vld [vmem:[%s145 + $0x40] sm:$0xff]
  %v155 = vld [vmem:[%s145 + $0x48] sm:$0xff]
  %v156 = vld [vmem:[%s145 + $0x50] sm:$0xff]
  %v157 = vld [vmem:[%s145 + $0x58] sm:$0xff]
  %v158 = vld [vmem:[%s145 + $0x60] sm:$0xff]
  %v159 = vld [vmem:[%s145 + $0x68] sm:$0xff]
  %v160 = vld [vmem:[%s145 + $0x70] sm:$0xff]
  %v161 = vld [vmem:[%s145 + $0x78] sm:$0xff]
  %s162 = scalar_lea.vmem %s4, 1
  %v163 = vld [vmem:[%s162] sm:$0x1]
  %v165 = vlaneseq
  %v166 = vshrl.u32 %v165, 7
  %v167 = vsub.s32 0, %v166
  %v168 = vrot.slane %v163, %v167
  %170 = vmatprep.subr.mxu0 0.0
  %171 = vmatpush1.msra.mxu0 %v146
  %172 = vmatprep.subr.mxu0 0.0
  %173 = vmatpush1.msra.mxu0 %v147
  %174 = vmatprep.subr.mxu0 0.0
  %175 = vmatpush1.msra.mxu0 %v148
  %176 = vmatprep.subr.mxu0 0.0
  %177 = vmatpush1.msra.mxu0 %v149
  %178 = vmatprep.subr.mxu0 0.0
  %179 = vmatpush1.msra.mxu0 %v150
  %180 = vmatprep.subr.mxu0 0.0
  %181 = vmatpush1.msra.mxu0 %v151
  %182 = vmatprep.subr.mxu0 0.0
  %183 = vmatpush1.msra.mxu0 %v152
  %184 = vmatprep.subr.mxu0 0.0
  %185 = vmatpush1.msra.mxu0 %v153
  %186 = vmatprep.subr.mxu0 0.0
  %187 = vmatpush1.msra.mxu0 %v154
  %188 = vmatprep.subr.mxu0 0.0
  %189 = vmatpush1.msra.mxu0 %v155
  %190 = vmatprep.subr.mxu0 0.0
  %191 = vmatpush1.msra.mxu0 %v156
  %192 = vmatprep.subr.mxu0 0.0
  %193 = vmatpush1.msra.mxu0 %v157
  %194 = vmatprep.subr.mxu0 0.0
  %195 = vmatpush1.msra.mxu0 %v158
  %196 = vmatprep.subr.mxu0 0.0
  %197 = vmatpush1.msra.mxu0 %v159
  %198 = vmatprep.subr.mxu0 0.0
  %199 = vmatpush1.msra.mxu0 %v160
  %200 = vmatprep.subr.mxu0 0.0
  %201 = vmatpush1.msra.mxu0 %v161
  %202 = vmatprep.subr.mxu0 0.0
  %203 = vmatpush1.msra.mxu0 0.0
  %204 = vmatprep.subr.mxu0 0.0
  %205 = vmatpush1.msra.mxu0 0.0
  %206 = vmatprep.subr.mxu0 0.0
  %207 = vmatpush1.msra.mxu0 0.0
  %208 = vmatprep.subr.mxu0 0.0
  %209 = vmatpush1.msra.mxu0 0.0
  %210 = vmatprep.subr.mxu0 0.0
  %211 = vmatpush1.msra.mxu0 0.0
  %212 = vmatprep.subr.mxu0 0.0
  %213 = vmatpush1.msra.mxu0 0.0
  %214 = vmatprep.subr.mxu0 0.0
  %215 = vmatpush1.msra.mxu0 0.0
  %216 = vmatprep.subr.mxu0 0.0
  %217 = vmatpush1.msra.mxu0 0.0
  %218 = vmatprep.subr.mxu0 0.0
  %219 = vmatpush1.msra.mxu0 0.0
  %220 = vmatprep.subr.mxu0 0.0
  %221 = vmatpush1.msra.mxu0 0.0
  %222 = vmatprep.subr.mxu0 0.0
  %223 = vmatpush1.msra.mxu0 0.0
  %224 = vmatprep.subr.mxu0 0.0
  %225 = vmatpush1.msra.mxu0 0.0
  %226 = vmatprep.subr.mxu0 0.0
  %227 = vmatpush1.msra.mxu0 0.0
  %228 = vmatprep.subr.mxu0 0.0
  %229 = vmatpush1.msra.mxu0 0.0
  %230 = vmatprep.subr.mxu0 0.0
  %231 = vmatpush1.msra.mxu0 0.0
  %232 = vmatprep.subr.mxu0 0.0
  %233 = vmatpush1.msra.mxu0 0.0
  %234 = vmatprep.mubr.f32.mxu0 0.0
  %235 = vmatmul.mubr.f32.gmra.mrb[0].mxu0 %v144
  %v236 = vpop.f32.mrb[0].mxu0
  %v237 = vadd.f32 %v168, %v236
  %v238 = vpop.f32.mrb[0].mxu0
  %239 = vdwg.mxu0
  %240 = vst [vmem:[%s5] sm:$0xff] %v237
  // Predicated region
  $region22: #{mlp_discriminator_forward.1} parent=0 // pred_check
    _
  $region23: #{mlp_discriminator_forward.1} parent=0 // pred_check_branch
    %242 = sbr.rel (0) target = $region25
  $region24: #{mlp_discriminator_forward.1} parent=0 // pred_region
    _
  $region25: #{mlp_discriminator_forward.1} parent=0 // pred_fallthru
    _
  // Predicated region
  $region26: #{mlp_discriminator_forward.1} parent=0 // pred_check
    _
  $region27: #{mlp_discriminator_forward.1} parent=0 // pred_check_branch
    %244 = sbr.rel (0) target = $region29
  $region28: #{mlp_discriminator_forward.1} parent=0 // pred_region
    _
  $region29: #{mlp_discriminator_forward.1} parent=0 // pred_fallthru
    _

</llo_original>
